<compile_context>
chip_gen: v7x
topology: tpu7x:2x2x1
jax: 0.10.0
libtpu: 0.0.40
codegen_flags: <defaults>
</compile_context>

<pallas_src>
import jax
import jax.numpy as jnp
from jax.experimental import pallas as pl
from jax.experimental.pallas import tpu as pltpu


def _w2v_kernel(emb_ref, wt_ref, b_ref, unnorm_ref, mj_ref, l_ref, m_sc):
    # emb_ref : (tb, D)  bf16    wt_ref : (D, tv) bf16    b_ref : (1, tv) f32
    # unnorm_ref : (tb, tv) f32  -- exp(logits - running_max) for this vocab tile
    # mj_ref     : (tb, nV) f32  -- running max AFTER each vocab tile (resident)
    # l_ref      : (tb, 1)  f32  -- running softmax denominator (resident accumulator)
    # m_sc       : (tb, 1)  f32  -- running max scratch (VMEM)
    vj = pl.program_id(1)

    @pl.when(vj == 0)
    def _():
        m_sc[...] = jnp.full_like(m_sc, -jnp.inf)
        l_ref[...] = jnp.zeros_like(l_ref)
        mj_ref[...] = jnp.zeros_like(mj_ref)

    # MXU: (tb, D) @ (D, tv) -> (tb, tv), f32 accumulation, no in-kernel transpose.
    logits = jnp.dot(emb_ref[...], wt_ref[...], preferred_element_type=jnp.float32)
    logits = logits + b_ref[...]

    # Online softmax update for this vocab tile.
    m_prev = m_sc[...]                                              # (tb, 1)
    m_new = jnp.maximum(m_prev, jnp.max(logits, axis=-1, keepdims=True))
    p = jnp.exp(logits - m_new)                                     # EUP
    alpha = jnp.exp(m_prev - m_new)                                 # exp(-inf)=0 at vj==0
    l_ref[...] = alpha * l_ref[...] + jnp.sum(p, axis=-1, keepdims=True)
    m_sc[...] = m_new

    # Record the running max for this tile (masked full-block write; avoids
    # dynamic lane slicing).  Block is resident across the whole vj loop.
    col = jax.lax.broadcasted_iota(jnp.int32, mj_ref.shape, 1)
    mj_ref[...] = jnp.where(col == vj, m_new, mj_ref[...])

    # Lane-dense unnormalized tile (normalized in the wrapper epilogue).
    unnorm_ref[...] = p


def word2vec_forward(x, emb_table, w, b, *, tb=None, tv=None):
    """x: (B,) int32 ids; returns (B, V) float32 softmax probabilities."""
    B = x.shape[0]
    V, D = w.shape

    if tb is None:
        tb = B if B <= 128 else 128
    if tv is None:
        tv = V if V <= 512 else 512
    assert B % tb == 0, "batch must be divisible by tb"
    assert V % tv == 0, "vocab must be divisible by tv"
    nB, nV = B // tb, V // tv

    # Glue: embedding gather (plain JAX), bf16 operands for the MXU, pre-transposed W.
    emb = jnp.take(emb_table, x, axis=0).astype(jnp.bfloat16)       # (B, D)
    wt = w.T.astype(jnp.bfloat16)                                   # (D, V) lane-dense V
    b2d = b.reshape(1, V).astype(jnp.float32)                       # (1, V)

    unnorm, mj, l = pl.pallas_call(
        _w2v_kernel,
        out_shape=(
            jax.ShapeDtypeStruct((B, V), jnp.float32),   # exp(logits - running_max)
            jax.ShapeDtypeStruct((B, nV), jnp.float32),  # per-tile running max
            jax.ShapeDtypeStruct((B, 1), jnp.float32),   # final denominator
        ),
        grid_spec=pltpu.PrefetchScalarGridSpec(
            num_scalar_prefetch=0,
            grid=(nB, nV),
            in_specs=[
                pl.BlockSpec((tb, D), lambda bi, vj: (bi, 0)),
                pl.BlockSpec((D, tv), lambda bi, vj: (0, vj)),
                pl.BlockSpec((1, tv), lambda bi, vj: (0, vj)),
            ],
            out_specs=[
                pl.BlockSpec((tb, tv), lambda bi, vj: (bi, vj)),
                pl.BlockSpec((tb, nV), lambda bi, vj: (bi, 0)),
                pl.BlockSpec((tb, 1), lambda bi, vj: (bi, 0)),
            ],
            scratch_shapes=[pltpu.VMEM((tb, 1), jnp.float32)],
        ),
        compiler_params=pltpu.CompilerParams(
            dimension_semantics=("parallel", "arbitrary"),
            vmem_limit_bytes=48 * 1024 * 1024,
        ),
    )(emb, wt, b2d)

    # Trivial epilogue: rescale each vocab tile to the global row max and normalize.
    m_final = mj[:, -1:]                                 # (B, 1) global row max
    scale = jnp.exp(mj - m_final) / l                    # (B, nV)
    probs = (unnorm.reshape(B, nV, tv) * scale[:, :, None]).reshape(B, V)
    return probs


if __name__ == "__main__":
    # Small synthetic config consistent with the module's forward.
    vocab_size = 2048     # V (multiple of tv=512 -> 4 vocab tiles, exercises online softmax)
    embedding_dim = 32    # D
    batch = 16            # B (tb=8 -> 2 batch tiles, exercises the parallel axis)

    key = jax.random.PRNGKey(0)
    k_emb, k_w, k_b, k_x = jax.random.split(key, 4)

    emb_table = jax.random.normal(k_emb, (vocab_size, embedding_dim), jnp.float32)
    lim = 1.0 / (embedding_dim ** 0.5)
    w = jax.random.uniform(k_w, (vocab_size, embedding_dim), jnp.float32, -lim, lim)
    b = jax.random.uniform(k_b, (vocab_size,), jnp.float32, -lim, lim)
    x = jax.random.randint(k_x, (batch,), 0, vocab_size, dtype=jnp.int32)

    fwd = jax.jit(word2vec_forward, static_argnames=("tb", "tv"))
    out = fwd(x, emb_table, w, b, tb=8, tv=512)
    out = jax.block_until_ready(out)

    # Reference (same bf16-operand / f32-accumulate matmul precision as the kernel).
    emb_f32 = jnp.take(emb_table, x, axis=0)
    ref_logits = jnp.dot(emb_f32.astype(jnp.bfloat16), w.T.astype(jnp.bfloat16),
                         preferred_element_type=jnp.float32) + b
    ref = jax.nn.softmax(ref_logits, axis=1)

    assert out.shape == (batch, vocab_size)
    assert jnp.allclose(jnp.sum(out, axis=1), 1.0, atol=1e-4)
    assert jnp.allclose(out, ref, atol=2e-5, rtol=1e-3)

    print("KERNEL_OK")
</pallas_src>

<mosaic_0001>
module attributes {stable_mosaic.version = 11 : i64} {
  func.func @_w2v_kernel(%arg0: i32, %arg1: i32, %arg2: memref<8x32xbf16, #tpu.memory_space<vmem>>, %arg3: memref<32x512xbf16, #tpu.memory_space<vmem>>, %arg4: memref<1x512xf32, #tpu.memory_space<vmem>>, %arg5: memref<8x512xf32, #tpu.memory_space<vmem>>, %arg6: memref<8x4xf32, #tpu.memory_space<vmem>>, %arg7: memref<8x1xf32, #tpu.memory_space<vmem>>, %arg8: memref<8x1xf32, #tpu.memory_space<vmem>>) attributes {dimension_semantics = [#tpu.dimension_semantics<parallel>, #tpu.dimension_semantics<arbitrary>], iteration_bounds = array<i64: 2, 4>, scalar_prefetch = 0 : i64, scratch_operands = 1 : i64, tpu.core_type = #tpu.core_type<tc>, window_params = [{transform_indices = @transform_0, window_bounds = array<i64: 8, 32>}, {transform_indices = @transform_1, window_bounds = array<i64: 32, 512>}, {transform_indices = @transform_2, window_bounds = array<i64: 1, 512>}, {transform_indices = @transform_3, window_bounds = array<i64: 8, 512>}, {transform_indices = @transform_4, window_bounds = array<i64: 8, 4>}, {transform_indices = @transform_5, window_bounds = array<i64: 8, 1>}]} {
    %c0_i32 = arith.constant 0 : i32
    %0 = arith.cmpi eq, %arg1, %c0_i32 : i32
    %1 = arith.extui %0 : i1 to i32
    %c0_i32_0 = arith.constant 0 : i32
    %2 = arith.cmpi ne, %1, %c0_i32_0 : i32
    scf.if %2 {
      %cst_22 = arith.constant 0xFF800000 : f32
      %34 = vector.broadcast %cst_22 : f32 to vector<8x1xf32>
      %c0_23 = arith.constant 0 : index
      %c0_24 = arith.constant 0 : index
      %35 = vector.load %arg8[%c0_23, %c0_24] : memref<8x1xf32, #tpu.memory_space<vmem>>, vector<8x1xf32>
      tpu.vector_store %arg8[%c0_23, %c0_24], %34 {strides = array<i32>} : memref<8x1xf32, #tpu.memory_space<vmem>>, vector<8x1xf32>,
      %cst_25 = arith.constant 0.000000e+00 : f32
      %36 = vector.broadcast %cst_25 : f32 to vector<8x1xf32>
      %c0_26 = arith.constant 0 : index
      %c0_27 = arith.constant 0 : index
      %37 = vector.load %arg7[%c0_26, %c0_27] : memref<8x1xf32, #tpu.memory_space<vmem>>, vector<8x1xf32>
      tpu.vector_store %arg7[%c0_26, %c0_27], %36 {strides = array<i32>} : memref<8x1xf32, #tpu.memory_space<vmem>>, vector<8x1xf32>,
      %cst_28 = arith.constant 0.000000e+00 : f32
      %38 = vector.broadcast %cst_28 : f32 to vector<8x4xf32>
      %c0_29 = arith.constant 0 : index
      %c0_30 = arith.constant 0 : index
      %39 = vector.load %arg6[%c0_29, %c0_30] : memref<8x4xf32, #tpu.memory_space<vmem>>, vector<8x4xf32>
      tpu.vector_store %arg6[%c0_29, %c0_30], %38 {strides = array<i32>} : memref<8x4xf32, #tpu.memory_space<vmem>>, vector<8x4xf32>,
    } else {
    }
    %c0 = arith.constant 0 : index
    %c0_1 = arith.constant 0 : index
    %3 = vector.load %arg2[%c0, %c0_1] : memref<8x32xbf16, #tpu.memory_space<vmem>>, vector<8x32xbf16>
    %c0_2 = arith.constant 0 : index
    %c0_3 = arith.constant 0 : index
    %4 = vector.load %arg3[%c0_2, %c0_3] : memref<32x512xbf16, #tpu.memory_space<vmem>>, vector<32x512xbf16>
    %cst = arith.constant dense<0.000000e+00> : vector<8x512xf32>
    %5 = tpu.matmul %3, %4, %cst {dimension_numbers = #tpu.dot_dimension_numbers<[1], [0], [0], [1], [0, 0, 1, 1], [], []>} : vector<8x32xbf16>, vector<32x512xbf16>, vector<8x512xf32> -> vector<8x512xf32>
    %c0_4 = arith.constant 0 : index
    %c0_5 = arith.constant 0 : index
    %6 = vector.load %arg4[%c0_4, %c0_5] : memref<1x512xf32, #tpu.memory_space<vmem>>, vector<1x512xf32>
    %7 = vector.broadcast %6 : vector<1x512xf32> to vector<8x512xf32>
    %8 = arith.addf %5, %7 : vector<8x512xf32>
    %c0_6 = arith.constant 0 : index
    %c0_7 = arith.constant 0 : index
    %9 = vector.load %arg8[%c0_6, %c0_7] : memref<8x1xf32, #tpu.memory_space<vmem>>, vector<8x1xf32>
    %cst_8 = arith.constant dense<0xFF800000> : vector<8xf32>
    %10 = vector.multi_reduction <maximumf>, %8, %cst_8 [1] : vector<8x512xf32> to vector<8xf32>
    %11 = vector.shape_cast %10 : vector<8xf32> to vector<8x1xf32>
    %12 = arith.maximumf %9, %11 : vector<8x1xf32>
    %13 = vector.broadcast %12 : vector<8x1xf32> to vector<8x512xf32>
    %14 = arith.subf %8, %13 : vector<8x512xf32>
    %15 = math.exp %14 : vector<8x512xf32>
    %16 = arith.subf %9, %12 : vector<8x1xf32>
    %17 = math.exp %16 : vector<8x1xf32>
    %c0_9 = arith.constant 0 : index
    %c0_10 = arith.constant 0 : index
    %18 = vector.load %arg7[%c0_9, %c0_10] : memref<8x1xf32, #tpu.memory_space<vmem>>, vector<8x1xf32>
    %19 = arith.mulf %17, %18 : vector<8x1xf32>
    %cst_11 = arith.constant dense<0.000000e+00> : vector<8xf32>
    %20 = vector.multi_reduction <add>, %15, %cst_11 [1] : vector<8x512xf32> to vector<8xf32>
    %21 = vector.shape_cast %20 : vector<8xf32> to vector<8x1xf32>
    %22 = arith.addf %19, %21 : vector<8x1xf32>
    %c0_12 = arith.constant 0 : index
    %c0_13 = arith.constant 0 : index
    %23 = vector.load %arg7[%c0_12, %c0_13] : memref<8x1xf32, #tpu.memory_space<vmem>>, vector<8x1xf32>
    tpu.vector_store %arg7[%c0_12, %c0_13], %22 {strides = array<i32>} : memref<8x1xf32, #tpu.memory_space<vmem>>, vector<8x1xf32>,
    %c0_14 = arith.constant 0 : index
    %c0_15 = arith.constant 0 : index
    %24 = vector.load %arg8[%c0_14, %c0_15] : memref<8x1xf32, #tpu.memory_space<vmem>>, vector<8x1xf32>
    tpu.vector_store %arg8[%c0_14, %c0_15], %12 {strides = array<i32>} : memref<8x1xf32, #tpu.memory_space<vmem>>, vector<8x1xf32>,
    %25 = tpu.iota {dimensions = array<i32: 1>} : vector<8x4xi32>
    %26 = vector.broadcast %arg1 : i32 to vector<8x4xi32>
    %27 = arith.cmpi eq, %25, %26 : vector<8x4xi32>
    %c0_16 = arith.constant 0 : index
    %c0_17 = arith.constant 0 : index
    %28 = vector.load %arg6[%c0_16, %c0_17] : memref<8x4xf32, #tpu.memory_space<vmem>>, vector<8x4xf32>
    %29 = vector.shape_cast %12 : vector<8x1xf32> to vector<8x1xf32>
    %30 = vector.broadcast %29 : vector<8x1xf32> to vector<8x4xf32>
    %31 = arith.select %27, %30, %28 : vector<8x4xi1>, vector<8x4xf32>
    %c0_18 = arith.constant 0 : index
    %c0_19 = arith.constant 0 : index
    %32 = vector.load %arg6[%c0_18, %c0_19] : memref<8x4xf32, #tpu.memory_space<vmem>>, vector<8x4xf32>
    tpu.vector_store %arg6[%c0_18, %c0_19], %31 {strides = array<i32>} : memref<8x4xf32, #tpu.memory_space<vmem>>, vector<8x4xf32>,
    %c0_20 = arith.constant 0 : index
    %c0_21 = arith.constant 0 : index
    %33 = vector.load %arg5[%c0_20, %c0_21] : memref<8x512xf32, #tpu.memory_space<vmem>>, vector<8x512xf32>
    tpu.vector_store %arg5[%c0_20, %c0_21], %15 {strides = array<i32>} : memref<8x512xf32, #tpu.memory_space<vmem>>, vector<8x512xf32>,
    return
  }
  func.func @transform_0(%arg0: i32, %arg1: i32) -> (i32, i32) {
    %c0_i32 = arith.constant 0 : i32
    %c0_i32_0 = arith.constant 0 : i32
    return %arg0, %c0_i32 : i32, i32
  }
  func.func @transform_1(%arg0: i32, %arg1: i32) -> (i32, i32) {
    %c0_i32 = arith.constant 0 : i32
    %c0_i32_0 = arith.constant 0 : i32
    return %c0_i32, %arg1 : i32, i32
  }
  func.func @transform_2(%arg0: i32, %arg1: i32) -> (i32, i32) {
    %c0_i32 = arith.constant 0 : i32
    %c0_i32_0 = arith.constant 0 : i32
    return %c0_i32, %arg1 : i32, i32
  }
  func.func @transform_3(%arg0: i32, %arg1: i32) -> (i32, i32) {
    %c0_i32 = arith.constant 0 : i32
    return %arg0, %arg1 : i32, i32
  }
  func.func @transform_4(%arg0: i32, %arg1: i32) -> (i32, i32) {
    %c0_i32 = arith.constant 0 : i32
    %c0_i32_0 = arith.constant 0 : i32
    return %arg0, %c0_i32 : i32, i32
  }
  func.func @transform_5(%arg0: i32, %arg1: i32) -> (i32, i32) {
    %c0_i32 = arith.constant 0 : i32
    %c0_i32_0 = arith.constant 0 : i32
    return %arg0, %c0_i32 : i32, i32
  }
}

</mosaic_0001>

<llo_original>
// kernel: mul.0
$region0: #{mul.0}
  #allocation2 [shape = 's32[1]{0}', space=sflag, size = 0x4, scoped, tag = 'scoped memory for mul.0']
  %s0 = inlined_call_operand.vmem [shape: f32[16,2048], index: 0, kind: input, shape index: {}]
  %s1 = inlined_call_operand.vmem [shape: f32[16,2048], index: 1, kind: input, shape index: {}]
  %s2 = inlined_call_operand.hbm [shape: f32[16,2048], index: 2, kind: output, shape index: {}]
  $region1: #{mul.0} parent=0
    #allocation0 [shape = 'u8[131072]{0}', space=vmem, size = 0x20000, scoped, tag = 'operand span for operand 2']
    #allocation1 [shape = 's32[1]{0}', space=sflag, size = 0x4, scoped, tag = 'scoped memory for mul.0']
    %3 = vsyncpa [#allocation1], 0
    %v4 = vld [vmem:[%s0] sm:$0xff]
    %v5 = vld [vmem:[%s1] sm:$0xff]
    %6 = xla_tuple %v4, %v5
    %7 = xla_tuple %6
    %v8 = vmul.f32 %v4, %v5
    %9 = xla_tuple %v8
    %10 = vst [vmem:[#allocation0] sm:$0xff] %v8
    %s11 = scalar_lea.vmem %s0, 128
    %v12 = vld [vmem:[%s11] sm:$0xff]
    %s13 = scalar_lea.vmem %s1, 128
    %v14 = vld [vmem:[%s13] sm:$0xff]
    %15 = xla_tuple %v12, %v14
    %16 = xla_tuple %15
    %v17 = vmul.f32 %v12, %v14
    %18 = xla_tuple %v17
    %s19 = scalar_lea.vmem [#allocation0], 128
    %20 = vst [vmem:[%s19] sm:$0xff] %v17
    %s21 = scalar_lea.vmem %s0, 8
    %v22 = vld [vmem:[%s21] sm:$0xff]
    %s23 = scalar_lea.vmem %s1, 8
    %v24 = vld [vmem:[%s23] sm:$0xff]
    %25 = xla_tuple %v22, %v24
    %26 = xla_tuple %25
    %v27 = vmul.f32 %v22, %v24
    %28 = xla_tuple %v27
    %s29 = scalar_lea.vmem [#allocation0], 8
    %30 = vst [vmem:[%s29] sm:$0xff] %v27
    %s31 = scalar_lea.vmem %s0, 136
    %v32 = vld [vmem:[%s31] sm:$0xff]
    %s33 = scalar_lea.vmem %s1, 136
    %v34 = vld [vmem:[%s33] sm:$0xff]
    %35 = xla_tuple %v32, %v34
    %36 = xla_tuple %35
    %v37 = vmul.f32 %v32, %v34
    %38 = xla_tuple %v37
    %s39 = scalar_lea.vmem [#allocation0], 136
    %40 = vst [vmem:[%s39] sm:$0xff] %v37
    %s41 = scalar_lea.vmem %s0, 16
    %v42 = vld [vmem:[%s41] sm:$0xff]
    %s43 = scalar_lea.vmem %s1, 16
    %v44 = vld [vmem:[%s43] sm:$0xff]
    %45 = xla_tuple %v42, %v44
    %46 = xla_tuple %45
    %v47 = vmul.f32 %v42, %v44
    %48 = xla_tuple %v47
    %s49 = scalar_lea.vmem [#allocation0], 16
    %50 = vst [vmem:[%s49] sm:$0xff] %v47
    %s51 = scalar_lea.vmem %s0, 144
    %v52 = vld [vmem:[%s51] sm:$0xff]
    %s53 = scalar_lea.vmem %s1, 144
    %v54 = vld [vmem:[%s53] sm:$0xff]
    %55 = xla_tuple %v52, %v54
    %56 = xla_tuple %55
    %v57 = vmul.f32 %v52, %v54
    %58 = xla_tuple %v57
    %s59 = scalar_lea.vmem [#allocation0], 144
    %60 = vst [vmem:[%s59] sm:$0xff] %v57
    %s61 = scalar_lea.vmem %s0, 24
    %v62 = vld [vmem:[%s61] sm:$0xff]
    %s63 = scalar_lea.vmem %s1, 24
    %v64 = vld [vmem:[%s63] sm:$0xff]
    %65 = xla_tuple %v62, %v64
    %66 = xla_tuple %65
    %v67 = vmul.f32 %v62, %v64
    %68 = xla_tuple %v67
    %s69 = scalar_lea.vmem [#allocation0], 24
    %70 = vst [vmem:[%s69] sm:$0xff] %v67
    %s71 = scalar_lea.vmem %s0, 152
    %v72 = vld [vmem:[%s71] sm:$0xff]
    %s73 = scalar_lea.vmem %s1, 152
    %v74 = vld [vmem:[%s73] sm:$0xff]
    %75 = xla_tuple %v72, %v74
    %76 = xla_tuple %75
    %v77 = vmul.f32 %v72, %v74
    %78 = xla_tuple %v77
    %s79 = scalar_lea.vmem [#allocation0], 152
    %80 = vst [vmem:[%s79] sm:$0xff] %v77
    %s81 = scalar_lea.vmem %s0, 32
    %v82 = vld [vmem:[%s81] sm:$0xff]
    %s83 = scalar_lea.vmem %s1, 32
    %v84 = vld [vmem:[%s83] sm:$0xff]
    %85 = xla_tuple %v82, %v84
    %86 = xla_tuple %85
    %v87 = vmul.f32 %v82, %v84
    %88 = xla_tuple %v87
    %s89 = scalar_lea.vmem [#allocation0], 32
    %90 = vst [vmem:[%s89] sm:$0xff] %v87
    %s91 = scalar_lea.vmem %s0, 160
    %v92 = vld [vmem:[%s91] sm:$0xff]
    %s93 = scalar_lea.vmem %s1, 160
    %v94 = vld [vmem:[%s93] sm:$0xff]
    %95 = xla_tuple %v92, %v94
    %96 = xla_tuple %95
    %v97 = vmul.f32 %v92, %v94
    %98 = xla_tuple %v97
    %s99 = scalar_lea.vmem [#allocation0], 160
    %100 = vst [vmem:[%s99] sm:$0xff] %v97
    %s101 = scalar_lea.vmem %s0, 40
    %v102 = vld [vmem:[%s101] sm:$0xff]
    %s103 = scalar_lea.vmem %s1, 40
    %v104 = vld [vmem:[%s103] sm:$0xff]
    %105 = xla_tuple %v102, %v104
    %106 = xla_tuple %105
    %v107 = vmul.f32 %v102, %v104
    %108 = xla_tuple %v107
    %s109 = scalar_lea.vmem [#allocation0], 40
    %110 = vst [vmem:[%s109] sm:$0xff] %v107
    %s111 = scalar_lea.vmem %s0, 168
    %v112 = vld [vmem:[%s111] sm:$0xff]
    %s113 = scalar_lea.vmem %s1, 168
    %v114 = vld [vmem:[%s113] sm:$0xff]
    %115 = xla_tuple %v112, %v114
    %116 = xla_tuple %115
    %v117 = vmul.f32 %v112, %v114
    %118 = xla_tuple %v117
    %s119 = scalar_lea.vmem [#allocation0], 168
    %120 = vst [vmem:[%s119] sm:$0xff] %v117
    %s121 = scalar_lea.vmem %s0, 48
    %v122 = vld [vmem:[%s121] sm:$0xff]
    %s123 = scalar_lea.vmem %s1, 48
    %v124 = vld [vmem:[%s123] sm:$0xff]
    %125 = xla_tuple %v122, %v124
    %126 = xla_tuple %125
    %v127 = vmul.f32 %v122, %v124
    %128 = xla_tuple %v127
    %s129 = scalar_lea.vmem [#allocation0], 48
    %130 = vst [vmem:[%s129] sm:$0xff] %v127
    %s131 = scalar_lea.vmem %s0, 176
    %v132 = vld [vmem:[%s131] sm:$0xff]
    %s133 = scalar_lea.vmem %s1, 176
    %v134 = vld [vmem:[%s133] sm:$0xff]
    %135 = xla_tuple %v132, %v134
    %136 = xla_tuple %135
    %v137 = vmul.f32 %v132, %v134
    %138 = xla_tuple %v137
    %s139 = scalar_lea.vmem [#allocation0], 176
    %140 = vst [vmem:[%s139] sm:$0xff] %v137
    %s141 = scalar_lea.vmem %s0, 56
    %v142 = vld [vmem:[%s141] sm:$0xff]
    %s143 = scalar_lea.vmem %s1, 56
    %v144 = vld [vmem:[%s143] sm:$0xff]
    %145 = xla_tuple %v142, %v144
    %146 = xla_tuple %145
    %v147 = vmul.f32 %v142, %v144
    %148 = xla_tuple %v147
    %s149 = scalar_lea.vmem [#allocation0], 56
    %150 = vst [vmem:[%s149] sm:$0xff] %v147
    %s151 = scalar_lea.vmem %s0, 184
    %v152 = vld [vmem:[%s151] sm:$0xff]
    %s153 = scalar_lea.vmem %s1, 184
    %v154 = vld [vmem:[%s153] sm:$0xff]
    %155 = xla_tuple %v152, %v154
    %156 = xla_tuple %155
    %v157 = vmul.f32 %v152, %v154
    %158 = xla_tuple %v157
    %s159 = scalar_lea.vmem [#allocation0], 184
    %160 = vst [vmem:[%s159] sm:$0xff] %v157
    %s161 = scalar_lea.vmem %s0, 64
    %v162 = vld [vmem:[%s161] sm:$0xff]
    %s163 = scalar_lea.vmem %s1, 64
    %v164 = vld [vmem:[%s163] sm:$0xff]
    %165 = xla_tuple %v162, %v164
    %166 = xla_tuple %165
    %v167 = vmul.f32 %v162, %v164
    %168 = xla_tuple %v167
    %s169 = scalar_lea.vmem [#allocation0], 64
    %170 = vst [vmem:[%s169] sm:$0xff] %v167
    %s171 = scalar_lea.vmem %s0, 192
    %v172 = vld [vmem:[%s171] sm:$0xff]
    %s173 = scalar_lea.vmem %s1, 192
    %v174 = vld [vmem:[%s173] sm:$0xff]
    %175 = xla_tuple %v172, %v174
    %176 = xla_tuple %175
    %v177 = vmul.f32 %v172, %v174
    %178 = xla_tuple %v177
    %s179 = scalar_lea.vmem [#allocation0], 192
    %180 = vst [vmem:[%s179] sm:$0xff] %v177
    %s181 = scalar_lea.vmem %s0, 72
    %v182 = vld [vmem:[%s181] sm:$0xff]
    %s183 = scalar_lea.vmem %s1, 72
    %v184 = vld [vmem:[%s183] sm:$0xff]
    %185 = xla_tuple %v182, %v184
    %186 = xla_tuple %185
    %v187 = vmul.f32 %v182, %v184
    %188 = xla_tuple %v187
    %s189 = scalar_lea.vmem [#allocation0], 72
    %190 = vst [vmem:[%s189] sm:$0xff] %v187
    %s191 = scalar_lea.vmem %s0, 200
    %v192 = vld [vmem:[%s191] sm:$0xff]
    %s193 = scalar_lea.vmem %s1, 200
    %v194 = vld [vmem:[%s193] sm:$0xff]
    %195 = xla_tuple %v192, %v194
    %196 = xla_tuple %195
    %v197 = vmul.f32 %v192, %v194
    %198 = xla_tuple %v197
    %s199 = scalar_lea.vmem [#allocation0], 200
    %200 = vst [vmem:[%s199] sm:$0xff] %v197
    %s201 = scalar_lea.vmem %s0, 80
    %v202 = vld [vmem:[%s201] sm:$0xff]
    %s203 = scalar_lea.vmem %s1, 80
    %v204 = vld [vmem:[%s203] sm:$0xff]
    %205 = xla_tuple %v202, %v204
    %206 = xla_tuple %205
    %v207 = vmul.f32 %v202, %v204
    %208 = xla_tuple %v207
    %s209 = scalar_lea.vmem [#allocation0], 80
    %210 = vst [vmem:[%s209] sm:$0xff] %v207
    %s211 = scalar_lea.vmem %s0, 208
    %v212 = vld [vmem:[%s211] sm:$0xff]
    %s213 = scalar_lea.vmem %s1, 208
    %v214 = vld [vmem:[%s213] sm:$0xff]
    %215 = xla_tuple %v212, %v214
    %216 = xla_tuple %215
    %v217 = vmul.f32 %v212, %v214
    %218 = xla_tuple %v217
    %s219 = scalar_lea.vmem [#allocation0], 208
    %220 = vst [vmem:[%s219] sm:$0xff] %v217
    %s221 = scalar_lea.vmem %s0, 88
    %v222 = vld [vmem:[%s221] sm:$0xff]
    %s223 = scalar_lea.vmem %s1, 88
    %v224 = vld [vmem:[%s223] sm:$0xff]
    %225 = xla_tuple %v222, %v224
    %226 = xla_tuple %225
    %v227 = vmul.f32 %v222, %v224
    %228 = xla_tuple %v227
    %s229 = scalar_lea.vmem [#allocation0], 88
    %230 = vst [vmem:[%s229] sm:$0xff] %v227
    %s231 = scalar_lea.vmem %s0, 216
    %v232 = vld [vmem:[%s231] sm:$0xff]
    %s233 = scalar_lea.vmem %s1, 216
    %v234 = vld [vmem:[%s233] sm:$0xff]
    %235 = xla_tuple %v232, %v234
    %236 = xla_tuple %235
    %v237 = vmul.f32 %v232, %v234
    %238 = xla_tuple %v237
    %s239 = scalar_lea.vmem [#allocation0], 216
    %240 = vst [vmem:[%s239] sm:$0xff] %v237
    %s241 = scalar_lea.vmem %s0, 96
    %v242 = vld [vmem:[%s241] sm:$0xff]
    %s243 = scalar_lea.vmem %s1, 96
    %v244 = vld [vmem:[%s243] sm:$0xff]
    %245 = xla_tuple %v242, %v244
    %246 = xla_tuple %245
    %v247 = vmul.f32 %v242, %v244
    %248 = xla_tuple %v247
    %s249 = scalar_lea.vmem [#allocation0], 96
    %250 = vst [vmem:[%s249] sm:$0xff] %v247
    %s251 = scalar_lea.vmem %s0, 224
    %v252 = vld [vmem:[%s251] sm:$0xff]
    %s253 = scalar_lea.vmem %s1, 224
    %v254 = vld [vmem:[%s253] sm:$0xff]
    %255 = xla_tuple %v252, %v254
    %256 = xla_tuple %255
    %v257 = vmul.f32 %v252, %v254
    %258 = xla_tuple %v257
    %s259 = scalar_lea.vmem [#allocation0], 224
    %260 = vst [vmem:[%s259] sm:$0xff] %v257
    %s261 = scalar_lea.vmem %s0, 104
    %v262 = vld [vmem:[%s261] sm:$0xff]
    %s263 = scalar_lea.vmem %s1, 104
    %v264 = vld [vmem:[%s263] sm:$0xff]
    %265 = xla_tuple %v262, %v264
    %266 = xla_tuple %265
    %v267 = vmul.f32 %v262, %v264
    %268 = xla_tuple %v267
    %s269 = scalar_lea.vmem [#allocation0], 104
    %270 = vst [vmem:[%s269] sm:$0xff] %v267
    %s271 = scalar_lea.vmem %s0, 232
    %v272 = vld [vmem:[%s271] sm:$0xff]
    %s273 = scalar_lea.vmem %s1, 232
    %v274 = vld [vmem:[%s273] sm:$0xff]
    %275 = xla_tuple %v272, %v274
    %276 = xla_tuple %275
    %v277 = vmul.f32 %v272, %v274
    %278 = xla_tuple %v277
    %s279 = scalar_lea.vmem [#allocation0], 232
    %280 = vst [vmem:[%s279] sm:$0xff] %v277
    %s281 = scalar_lea.vmem %s0, 112
    %v282 = vld [vmem:[%s281] sm:$0xff]
    %s283 = scalar_lea.vmem %s1, 112
    %v284 = vld [vmem:[%s283] sm:$0xff]
    %285 = xla_tuple %v282, %v284
    %286 = xla_tuple %285
    %v287 = vmul.f32 %v282, %v284
    %288 = xla_tuple %v287
    %s289 = scalar_lea.vmem [#allocation0], 112
    %290 = vst [vmem:[%s289] sm:$0xff] %v287
    %s291 = scalar_lea.vmem %s0, 240
    %v292 = vld [vmem:[%s291] sm:$0xff]
    %s293 = scalar_lea.vmem %s1, 240
    %v294 = vld [vmem:[%s293] sm:$0xff]
    %295 = xla_tuple %v292, %v294
    %296 = xla_tuple %295
    %v297 = vmul.f32 %v292, %v294
    %298 = xla_tuple %v297
    %s299 = scalar_lea.vmem [#allocation0], 240
    %300 = vst [vmem:[%s299] sm:$0xff] %v297
    %s301 = scalar_lea.vmem %s0, 120
    %v302 = vld [vmem:[%s301] sm:$0xff]
    %s303 = scalar_lea.vmem %s1, 120
    %v304 = vld [vmem:[%s303] sm:$0xff]
    %305 = xla_tuple %v302, %v304
    %306 = xla_tuple %305
    %v307 = vmul.f32 %v302, %v304
    %308 = xla_tuple %v307
    %s309 = scalar_lea.vmem [#allocation0], 120
    %310 = vst [vmem:[%s309] sm:$0xff] %v307
    %s311 = scalar_lea.vmem %s0, 248
    %v312 = vld [vmem:[%s311] sm:$0xff]
    %s313 = scalar_lea.vmem %s1, 248
    %v314 = vld [vmem:[%s313] sm:$0xff]
    %315 = xla_tuple %v312, %v314
    %316 = xla_tuple %315
    %v317 = vmul.f32 %v312, %v314
    %318 = xla_tuple %v317
    %s319 = scalar_lea.vmem [#allocation0], 248
    %320 = vst [vmem:[%s319] sm:$0xff] %v317
    %s322 = ssub.s32 4096, 4096
    %323 = vsyncadd [#allocation1], %s322
    %s324 = sshll.u32 [#allocation0], 4
    %s325 = int_to_ptr.vmem [resolvable:$true] %s324
    %330 = dma.vmem_to_hbm [thread:$0]  %s325, 4096, %s2, [#allocation1], 2048, 2048, 128
    %331 = dma.done [#allocation1], 4096
    %332 = vsyncpa [#allocation1], 1

// kernel: word2vec_forward.1
$region0: #{word2vec_forward.1}
  #allocation0 [shape = 'u32[]', space=smem, size = 0x4, offset = 0x4, fixed_abs, tag = 'smem constant byte address 0x4 - core index']
  #allocation1 [shape = 'u32[144,128]{1,0:T(1,128)}', space=vmem, size = 0x12000, scoped, tag = 'internal scratch']
  #allocation2 [shape = 'f32[8,1]{1,0:T(8,128)}', space=vmem, size = 0x1000, scoped, tag = 'scratch operand']
  %s0 = inlined_call_operand.vmem [shape: bf16[16,32], index: 0, kind: input, shape index: {}]
  %s1 = inlined_call_operand.vmem [shape: bf16[32,2048], index: 1, kind: input, shape index: {}]
  %s2 = inlined_call_operand.vmem [shape: f32[1,2048], index: 2, kind: input, shape index: {}]
  %s3 = inlined_call_operand.vmem [shape: f32[16,2048], index: 3, kind: output, shape index: {0}]
  %s4 = inlined_call_operand.vmem [shape: f32[16,4], index: 4, kind: output, shape index: {1}]
  %s5 = inlined_call_operand.vmem [shape: f32[16,1], index: 5, kind: output, shape index: {2}]
  %6 = xla_tuple %s3, %s4, %s5
  %s7 = sld [smem:[#allocation0]]
  $region88: #{word2vec_forward.1} parent=0
    _
  %s9 = ssub.s32 1, %s7
  %s10 = scalar_select 0, %s9, %s7
  $region1: #{word2vec_forward.1} parent=0
    #allocation3 [shape = 'u8[65536]{0}', space=vmem, size = 0x10000, scoped, tag = 'input window, operand 1']
    loop: start=0, step=1, limit=10
    $region2: #{word2vec_forward.1} parent=1 // loop_pre_header
      _
    $region3: #{word2vec_forward.1} parent=1 // loop_header
      %s12 = sphi 0, %s16
      %p13 = scmp.ge.s32.totalorder %s12, 10
      %s19 = sphi 0, %s31
      %s20 = sphi 0, %s27
      %s21 = sphi 0, %s19
      %s22 = sphi 0, %s20
      %s23 = sphi 0, %s21
      %s24 = sphi 0, %s22
      %s34 = sphi 0, %s36
      %s37 = sphi 0, %s34
      %s38 = sphi 0, %s37
      %s54 = sphi 0, %s38
      %s60 = sphi 0, %s62
      %s63 = sphi 0, %s60
      %s64 = sphi 0, %s63
      %s80 = sphi 0, %s64
      %s86 = sphi 0, %s88
      %s89 = sphi 0, %s86
      %s90 = sphi 0, %s89
      %s106 = sphi 0, %s90
      %s114 = sphi 0, %s116
      %s117 = sphi 0, %s114
      %s118 = sphi 0, %s117
      %s134 = sphi 0, %s118
      %s140 = sphi 0, %s142
      %s143 = sphi 0, %s140
      %s144 = sphi 0, %s143
      %s160 = sphi 0, %s144
      %s166 = sphi 0, %s168
      %s169 = sphi 0, %s166
      %s170 = sphi 0, %s169
      %s186 = sphi 0, %s170
    $region4: #{word2vec_forward.1} parent=1 // loop_header_branch
      %15 = sbr.rel (%p13) target = $region8
    $region5: #{word2vec_forward.1} parent=1 // loop_body
      %s17 = ssub.s32 %s12, 1
      %s18 = ssub.s32 %s12, 2
      %s25 = sadd.s32 1, %s20
      %p26 = scmp.ge.s32.totalorder %s25, 4
      %s27 = scalar_select %p26, 0, %s25
      %s28 = sadd.s32 1, %s19
      %s29 = scalar_select %p26, %s28, %s19
      %p30 = scmp.ge.s32.totalorder %s29, 2
      %s31 = scalar_select %p30, 0, %s29
      %s32 = ssub.s32 %s19, %s31
      %p33 = scmp.eq.s32.totalorder %s32, 0
      %s35 = sadd.s32 %s34, 1
      %s36 = scalar_select %p33, %s34, %s35
      %p39 = pneg %p33
      %p40 = scmp.eq.s32.totalorder %s12, 7
      %p41 = por %p39, %p40
      %p42 = scmp.ne.s32.totalorder %s34, %s37
      %p43 = scmp.eq.s32.totalorder %s12, 0
      %p44 = por %p42, %p43
      %p45 = scmp.ne.s32.totalorder %s34, %s37
      %p46 = scmp.eq.s32.totalorder %s17, 7
      %p47 = por %p45, %p46
      %p48 = scmp.ne.s32.totalorder %s37, %s38
      %p49 = scmp.eq.s32.totalorder %s17, 0
      %p50 = por %p48, %p49
      %p51 = scmp.ne.s32.totalorder %s37, %s38
      %p52 = scmp.eq.s32.totalorder %s18, 7
      %p53 = por %p51, %p52
      %p55 = scmp.ne.s32.totalorder %s38, %s54
      %p56 = scmp.eq.s32.totalorder %s18, 0
      %p57 = por %p55, %p56
      %s58 = ssub.s32 %s20, %s27
      %p59 = scmp.eq.s32.totalorder %s58, 0
      %s61 = sadd.s32 %s60, 1
      %s62 = scalar_select %p59, %s60, %s61
      %p65 = pneg %p59
      %p66 = scmp.eq.s32.totalorder %s12, 7
      %p67 = por %p65, %p66
      %p68 = scmp.ne.s32.totalorder %s60, %s63
      %p69 = scmp.eq.s32.totalorder %s12, 0
      %p70 = por %p68, %p69
      %p71 = scmp.ne.s32.totalorder %s60, %s63
      %p72 = scmp.eq.s32.totalorder %s17, 7
      %p73 = por %p71, %p72
      %p74 = scmp.ne.s32.totalorder %s63, %s64
      %p75 = scmp.eq.s32.totalorder %s17, 0
      %p76 = por %p74, %p75
      %p77 = scmp.ne.s32.totalorder %s63, %s64
      %p78 = scmp.eq.s32.totalorder %s18, 7
      %p79 = por %p77, %p78
      %p81 = scmp.ne.s32.totalorder %s64, %s80
      %p82 = scmp.eq.s32.totalorder %s18, 0
      %p83 = por %p81, %p82
      %s84 = ssub.s32 %s20, %s27
      %p85 = scmp.eq.s32.totalorder %s84, 0
      %s87 = sadd.s32 %s86, 1
      %s88 = scalar_select %p85, %s86, %s87
      %p91 = pneg %p85
      %p92 = scmp.eq.s32.totalorder %s12, 7
      %p93 = por %p91, %p92
      %p94 = scmp.ne.s32.totalorder %s86, %s89
      %p95 = scmp.eq.s32.totalorder %s12, 0
      %p96 = por %p94, %p95
      %p97 = scmp.ne.s32.totalorder %s86, %s89
      %p98 = scmp.eq.s32.totalorder %s17, 7
      %p99 = por %p97, %p98
      %p100 = scmp.ne.s32.totalorder %s89, %s90
      %p101 = scmp.eq.s32.totalorder %s17, 0
      %p102 = por %p100, %p101
      %p103 = scmp.ne.s32.totalorder %s89, %s90
      %p104 = scmp.eq.s32.totalorder %s18, 7
      %p105 = por %p103, %p104
      %p107 = scmp.ne.s32.totalorder %s90, %s106
      %p108 = scmp.eq.s32.totalorder %s18, 0
      %p109 = por %p107, %p108
      %s110 = ssub.s32 %s19, %s31
      %s111 = ssub.s32 %s20, %s27
      %s112 = sor.u32 %s110, %s111
      %p113 = scmp.eq.s32.totalorder %s112, 0
      %s115 = sadd.s32 %s114, 1
      %s116 = scalar_select %p113, %s114, %s115
      %p119 = pneg %p113
      %p120 = scmp.eq.s32.totalorder %s12, 7
      %p121 = por %p119, %p120
      %p122 = scmp.ne.s32.totalorder %s114, %s117
      %p123 = scmp.eq.s32.totalorder %s12, 0
      %p124 = por %p122, %p123
      %p125 = scmp.ne.s32.totalorder %s114, %s117
      %p126 = scmp.eq.s32.totalorder %s17, 7
      %p127 = por %p125, %p126
      %p128 = scmp.ne.s32.totalorder %s117, %s118
      %p129 = scmp.eq.s32.totalorder %s17, 0
      %p130 = por %p128, %p129
      %p131 = scmp.ne.s32.totalorder %s117, %s118
      %p132 = scmp.eq.s32.totalorder %s18, 7
      %p133 = por %p131, %p132
      %p135 = scmp.ne.s32.totalorder %s118, %s134
      %p136 = scmp.eq.s32.totalorder %s18, 0
      %p137 = por %p135, %p136
      %s138 = ssub.s32 %s19, %s31
      %p139 = scmp.eq.s32.totalorder %s138, 0
      %s141 = sadd.s32 %s140, 1
      %s142 = scalar_select %p139, %s140, %s141
      %p145 = pneg %p139
      %p146 = scmp.eq.s32.totalorder %s12, 7
      %p147 = por %p145, %p146
      %p148 = scmp.ne.s32.totalorder %s140, %s143
      %p149 = scmp.eq.s32.totalorder %s12, 0
      %p150 = por %p148, %p149
      %p151 = scmp.ne.s32.totalorder %s140, %s143
      %p152 = scmp.eq.s32.totalorder %s17, 7
      %p153 = por %p151, %p152
      %p154 = scmp.ne.s32.totalorder %s143, %s144
      %p155 = scmp.eq.s32.totalorder %s17, 0
      %p156 = por %p154, %p155
      %p157 = scmp.ne.s32.totalorder %s143, %s144
      %p158 = scmp.eq.s32.totalorder %s18, 7
      %p159 = por %p157, %p158
      %p161 = scmp.ne.s32.totalorder %s144, %s160
      %p162 = scmp.eq.s32.totalorder %s18, 0
      %p163 = por %p161, %p162
      %s164 = ssub.s32 %s19, %s31
      %p165 = scmp.eq.s32.totalorder %s164, 0
      %s167 = sadd.s32 %s166, 1
      %s168 = scalar_select %p165, %s166, %s167
      %p171 = pneg %p165
      %p172 = scmp.eq.s32.totalorder %s12, 7
      %p173 = por %p171, %p172
      %p174 = scmp.ne.s32.totalorder %s166, %s169
      %p175 = scmp.eq.s32.totalorder %s12, 0
      %p176 = por %p174, %p175
      %p177 = scmp.ne.s32.totalorder %s166, %s169
      %p178 = scmp.eq.s32.totalorder %s17, 7
      %p179 = por %p177, %p178
      %p180 = scmp.ne.s32.totalorder %s169, %s170
      %p181 = scmp.eq.s32.totalorder %s17, 0
      %p182 = por %p180, %p181
      %p183 = scmp.ne.s32.totalorder %s169, %s170
      %p184 = scmp.eq.s32.totalorder %s18, 7
      %p185 = por %p183, %p184
      %p187 = scmp.ne.s32.totalorder %s170, %s186
      %p188 = scmp.eq.s32.totalorder %s18, 0
      %p189 = por %p187, %p188
      %p190 = scmp.le.s32.totalorder 1, %s12
      %p191 = scmp.lt.s32.totalorder %s12, 9
      %p192 = pnand %p190, %p191
      %p193 = pneg %p192
      // Predicated region
      $region9: #{word2vec_forward.1} parent=5 // pred_check
        _
      $region10: #{word2vec_forward.1} parent=5 // pred_check_branch
        %195 = sbr.rel (%p192) target = $region12
      $region11: #{word2vec_forward.1} parent=5 // pred_region
        %s196 = ssub.s32 %s12, 1
      $region12: #{word2vec_forward.1} parent=5 // pred_fallthru
        _
      %p197 = scmp.lt.s32.totalorder %s12, 8
      // Predicated region
      $region13: #{word2vec_forward.1} parent=5 // pred_check
        %p198 = pneg %p197
      $region14: #{word2vec_forward.1} parent=5 // pred_check_branch
        %200 = sbr.rel (%p198) target = $region16
      $region15: #{word2vec_forward.1} parent=5 // pred_region
        // Predicated region
        $region17: #{word2vec_forward.1} parent=15 // pred_check
          %p201 = pneg %p44
        $region18: #{word2vec_forward.1} parent=15 // pred_check_branch
          %203 = sbr.rel (%p201) target = $region20
        $region19: #{word2vec_forward.1} parent=15 // pred_region
          %p204 = scmp.lt.s32.totalorder %s19, 1
          %s205 = scalar_select %p204, %s19, 1
          %s206 = smul.addr %s205, 4
          %s207 = scalar_lea.vmem %s0, %s206
        $region20: #{word2vec_forward.1} parent=15 // pred_fallthru
          _
        // Predicated region
        $region21: #{word2vec_forward.1} parent=15 // pred_check
          %p208 = pneg %p70
        $region22: #{word2vec_forward.1} parent=15 // pred_check_branch
          %210 = sbr.rel (%p208) target = $region24
        $region23: #{word2vec_forward.1} parent=15 // pred_region
          %s211 = sand.u32 %s60, 1
          %s212 = sand.u32 %s60, 1
          %s213 = smul.addr %s212, 64
          %s214 = scalar_lea.vmem [#allocation3], %s213
          %s215 = smul.u32 4, %s20
          %s216 = smul.addr %s215, 4
          %s217 = scalar_lea.vmem %s1, %s216
          // Predicated region
          $region25: #{word2vec_forward.1} parent=23 // pred_check
            _
          $region26: #{word2vec_forward.1} parent=23 // pred_check_branch
            %219 = sbr.rel (0) target = $region28
          $region27: #{word2vec_forward.1} parent=23 // pred_region
            // Predicated region
            $region29: #{word2vec_forward.1} parent=27 // pred_check
              _
            $region30: #{word2vec_forward.1} parent=27 // pred_check_branch
              %221 = sbr.rel (0) target = $region32
            $region31: #{word2vec_forward.1} parent=27 // pred_region
              loop: start=0, step=1, limit=1
              $region33: #{word2vec_forward.1} parent=31 // loop_pre_header
                _
              $region34: #{word2vec_forward.1} parent=31 // loop_header
                %s223 = sphi 0, %s227
                %p224 = scmp.ge.s32.totalorder %s223, 1
                %s228 = sphi %s217, %s217
                %s229 = sphi %s214, %s214
              $region35: #{word2vec_forward.1} parent=31 // loop_header_branch
                %226 = sbr.rel (%p224) target = $region39
              $region36: #{word2vec_forward.1} parent=31 // loop_body
                %v230 = vld [vmem:[%s228] sm:$0xff]
                %231 = vst [vmem:[%s229] sm:$0xff] %v230
                %v232 = vld [vmem:[%s228 + $0x8] sm:$0xff]
                %233 = vst [vmem:[%s229 + $0x8] sm:$0xff] %v232
                %v234 = vld [vmem:[%s228 + $0x40] sm:$0xff]
                %235 = vst [vmem:[%s229 + $0x10] sm:$0xff] %v234
                %v236 = vld [vmem:[%s228 + $0x48] sm:$0xff]
                %237 = vst [vmem:[%s229 + $0x18] sm:$0xff] %v236
                %v238 = vld [vmem:[%s228 + $0x80] sm:$0xff]
                %239 = vst [vmem:[%s229 + $0x20] sm:$0xff] %v238
                %v240 = vld [vmem:[%s228 + $0x88] sm:$0xff]
                %241 = vst [vmem:[%s229 + $0x28] sm:$0xff] %v240
                %v242 = vld [vmem:[%s228 + $0xc0] sm:$0xff]
                %243 = vst [vmem:[%s229 + $0x30] sm:$0xff] %v242
                %v244 = vld [vmem:[%s228 + $0xc8] sm:$0xff]
                %245 = vst [vmem:[%s229 + $0x38] sm:$0xff] %v244
              $region37: #{word2vec_forward.1} parent=31 // loop_footer
                %s227 = sadd.s32 1, %s223
              $region38: #{word2vec_forward.1} parent=31 // loop_footer_branch
                %222 = sbr.rel target = $region34
              $region39: #{word2vec_forward.1} parent=31 // loop_exit
                _
            $region32: #{word2vec_forward.1} parent=27 // pred_fallthru
              _
            // Predicated region
            $region40: #{word2vec_forward.1} parent=27 // pred_check
              _
            $region41: #{word2vec_forward.1} parent=27 // pred_check_branch
              %247 = sbr.rel target = $region43
            $region42: #{word2vec_forward.1} parent=27 // pred_region
              _
            $region43: #{word2vec_forward.1} parent=27 // pred_fallthru
              _
          $region28: #{word2vec_forward.1} parent=23 // pred_fallthru
            _
          %248 = vnop
        $region24: #{word2vec_forward.1} parent=15 // pred_fallthru
          _
        // Predicated region
        $region44: #{word2vec_forward.1} parent=15 // pred_check
          %p249 = pneg %p96
        $region45: #{word2vec_forward.1} parent=15 // pred_check_branch
          %251 = sbr.rel (%p249) target = $region47
        $region46: #{word2vec_forward.1} parent=15 // pred_region
          %s252 = smul.u32 4, %s20
          %p253 = scmp.lt.s32.totalorder %s252, 15
          %s254 = scalar_select %p253, %s252, 15
          %s255 = scalar_lea.vmem %s2, %s254
          %s256 = smul.u32 4, %s20
        $region47: #{word2vec_forward.1} parent=15 // pred_fallthru
          _
      $region16: #{word2vec_forward.1} parent=5 // pred_fallthru
        _
      %p257 = scmp.le.s32.totalorder 1, %s12
      %p258 = scmp.lt.s32.totalorder %s12, 9
      %p259 = pnand %p257, %p258
      %p260 = pneg %p259
      // Predicated region
      $region48: #{word2vec_forward.1} parent=5 // pred_check
        _
      $region49: #{word2vec_forward.1} parent=5 // pred_check_branch
        %262 = sbr.rel (%p259) target = $region51
      $region50: #{word2vec_forward.1} parent=5 // pred_region
        %s263 = ssub.s32 %s12, 1
        %s264 = sand.u32 %s63, 1
        %s265 = sand.u32 %s63, 1
        %s266 = smul.addr %s265, 64
        %s267 = scalar_lea.vmem [#allocation3], %s266
        // Predicated region
        $region52: #{word2vec_forward.1} parent=50 // pred_check
          %p268 = pneg %p76
        $region53: #{word2vec_forward.1} parent=50 // pred_check_branch
          %270 = sbr.rel (%p268) target = $region55
        $region54: #{word2vec_forward.1} parent=50 // pred_region
          _
        $region55: #{word2vec_forward.1} parent=50 // pred_fallthru
          _
        %p271 = scmp.lt.s32.totalorder %s21, 1
        %s272 = scalar_select %p271, %s21, 1
        %s273 = smul.addr %s272, 4
        %s274 = scalar_lea.vmem %s0, %s273
        %p275 = pneg %p50
        %p276 = pneg %p47
        %s277 = sand.u32 %s63, 1
        %s278 = sand.u32 %s63, 1
        %s279 = smul.addr %s278, 64
        %s280 = scalar_lea.vmem [#allocation3], %s279
        %p281 = pneg %p76
        %p282 = pneg %p73
        %s283 = smul.u32 4, %s22
        %p284 = scmp.lt.s32.totalorder %s283, 15
        %s285 = scalar_select %p284, %s283, 15
        %s286 = scalar_lea.vmem %s2, %s285
        %p287 = pneg %p102
        %p288 = pneg %p99
        %p289 = pneg %p130
        %p290 = pneg %p127
        %s291 = smul.u32 4, %s22
        %p292 = scmp.lt.s32.totalorder %s21, 1
        %s293 = scalar_select %p292, %s21, 1
        %p294 = scmp.lt.s32.totalorder %s291, 15
        %s295 = scalar_select %p294, %s291, 15
        %s296 = smul.addr %s293, 16
        %s297 = sadd.s32 %s295, %s296
        %s298 = smul.addr %s297, 8
        %s299 = scalar_lea.vmem %s3, %s298
        %p300 = pneg %p156
        %p301 = pneg %p153
        %p302 = scmp.lt.s32.totalorder %s21, 1
        %s303 = scalar_select %p302, %s21, 1
        %s304 = smul.addr %s303, 8
        %s305 = scalar_lea.vmem %s4, %s304
        %p306 = pneg %p182
        %p307 = pneg %p179
        %p308 = scmp.lt.s32.totalorder %s21, 1
        %s309 = scalar_select %p308, %s21, 1
        %s310 = smul.addr %s309, 8
        %s311 = scalar_lea.vmem %s5, %s310
        %p312 = scmp.lt.s32.totalorder %s21, 1
        %s313 = scalar_select %p312, %s21, 1
        %s314 = smul.addr %s313, 4
        %s315 = scalar_lea.vmem %s0, %s314
        %s316 = smul.u32 4, %s22
        %s317 = smul.u32 4, %s22
        %p318 = scmp.lt.s32.totalorder %s317, 15
        %s319 = scalar_select %p318, %s317, 15
        %s320 = scalar_lea.vmem %s2, %s319
        %s321 = smul.u32 4, %s22
        %s322 = smul.u32 4, %s22
        %p323 = scmp.lt.s32.totalorder %s21, 1
        %s324 = scalar_select %p323, %s21, 1
        %p325 = scmp.lt.s32.totalorder %s322, 15
        %s326 = scalar_select %p325, %s322, 15
        %s327 = smul.addr %s324, 16
        %s328 = sadd.s32 %s326, %s327
        %s329 = smul.addr %s328, 8
        %s330 = scalar_lea.vmem %s3, %s329
        %s331 = smul.u32 4, %s22
        %p332 = scmp.lt.s32.totalorder %s21, 1
        %s333 = scalar_select %p332, %s21, 1
        %s334 = smul.addr %s333, 8
        %s335 = scalar_lea.vmem %s4, %s334
        %p336 = scmp.lt.s32.totalorder %s21, 1
        %s337 = scalar_select %p336, %s21, 1
        %s338 = smul.addr %s337, 8
        %s339 = scalar_lea.vmem %s5, %s338
        %p341 = scmp.eq.s32.totalorder %s22, 0
        // Predicated region
        $region56: #{word2vec_forward.1} parent=50 // pred_check
          %p342 = pneg %p341
        $region57: #{word2vec_forward.1} parent=50 // pred_check_branch
          %344 = sbr.rel (%p342) target = $region59
        $region58: #{word2vec_forward.1} parent=50 // pred_region
          %vm345 = vcmask 7168
          %346 = vst.msk [vmem:[#allocation2] sm:$0xff] %vm345, -inf
          %347 = vst.msk [vmem:[%s339] sm:$0xff] %vm345, 0.0
          %vm348 = vcmask 31744
          %349 = vst.msk [vmem:[%s335] sm:$0xff] %vm348, 0.0
        $region59: #{word2vec_forward.1} parent=50 // pred_fallthru
          _
        %v350 = vld [vmem:[%s315] sm:$0xf]
        %v351 = vld [vmem:[%s267] sm:$0xff]
        %v352 = vld [vmem:[%s267 + $0x8] sm:$0xff]
        %v353 = vld [vmem:[%s267 + $0x10] sm:$0xff]
        %v354 = vld [vmem:[%s267 + $0x18] sm:$0xff]
        %v355 = vld [vmem:[%s267 + $0x20] sm:$0xff]
        %v356 = vld [vmem:[%s267 + $0x28] sm:$0xff]
        %v357 = vld [vmem:[%s267 + $0x30] sm:$0xff]
        %v358 = vld [vmem:[%s267 + $0x38] sm:$0xff]
        %v359 = vld [vmem:[%s320] sm:$0xf]
        %v361 = vlaneseq
        %v362 = vshrl.u32 %v361, 7
        %v363 = vsub.s32 0, %v362
        %v364 = vrot.slane %v359, %v363
        %v365 = vlaneseq
        %v366 = vshrl.u32 %v365, 7
        %v367 = vsub.s32 1, %v366
        %v368 = vrot.slane %v359, %v367
        %v369 = vlaneseq
        %v370 = vshrl.u32 %v369, 7
        %v371 = vsub.s32 2, %v370
        %v372 = vrot.slane %v359, %v371
        %v373 = vlaneseq
        %v374 = vshrl.u32 %v373, 7
        %v375 = vsub.s32 3, %v374
        %v376 = vrot.slane %v359, %v375
        %v389 = vunpack.c.l.b16 %v351
        %v390 = vunpack.c.h.b16 %v351
        %v391 = vunpack.c.l.b16 %v352
        %v392 = vunpack.c.h.b16 %v352
        %v393 = vunpack.c.l.b16 %v353
        %v394 = vunpack.c.h.b16 %v353
        %v395 = vunpack.c.l.b16 %v354
        %v396 = vunpack.c.h.b16 %v354
        %v397 = vunpack.c.l.b16 %v355
        %v398 = vunpack.c.h.b16 %v355
        %v399 = vunpack.c.l.b16 %v356
        %v400 = vunpack.c.h.b16 %v356
        %v401 = vunpack.c.l.b16 %v357
        %v402 = vunpack.c.h.b16 %v357
        %v403 = vunpack.c.l.b16 %v358
        %v404 = vunpack.c.h.b16 %v358
        %v405 = vpack.c.b16 %v393, %v389
        %v406 = vpack.c.b16 %v394, %v390
        %v407 = vpack.c.b16 %v395, %v391
        %v408 = vpack.c.b16 %v396, %v392
        %v409 = vpack.c.b16 %v401, %v397
        %v410 = vpack.c.b16 %v402, %v398
        %v411 = vpack.c.b16 %v403, %v399
        %v412 = vpack.c.b16 %v404, %v400
        %vm421 = vcmask 261120
        %v423 = vsel %vm421, %v350, 0
        %425 = vmatprep.subr.bf16.mxu0 %v406
        %426 = vmatpush1.bf16.msra.mxu0 %v405
        %427 = vmatprep.subr.bf16.mxu0 %v410
        %428 = vmatpush1.bf16.msra.mxu0 %v409
        %429 = vmatprep.subr.bf16.mxu0 0
        %430 = vmatpush1.bf16.msra.mxu0 0
        %431 = vmatprep.subr.bf16.mxu0 0
        %432 = vmatpush1.bf16.msra.mxu0 0
        %433 = vmatprep.subr.bf16.mxu0 0
        %434 = vmatpush1.bf16.msra.mxu0 0
        %435 = vmatprep.subr.bf16.mxu0 0
        %436 = vmatpush1.bf16.msra.mxu0 0
        %437 = vmatprep.subr.bf16.mxu0 0
        %438 = vmatpush1.bf16.msra.mxu0 0
        %439 = vmatprep.subr.bf16.mxu0 0
        %440 = vmatpush1.bf16.msra.mxu0 0
        %441 = vmatprep.subr.bf16.mxu0 0
        %442 = vmatpush1.bf16.msra.mxu0 0
        %443 = vmatprep.subr.bf16.mxu0 0
        %444 = vmatpush1.bf16.msra.mxu0 0
        %445 = vmatprep.subr.bf16.mxu0 0
        %446 = vmatpush1.bf16.msra.mxu0 0
        %447 = vmatprep.subr.bf16.mxu0 0
        %448 = vmatpush1.bf16.msra.mxu0 0
        %449 = vmatprep.subr.bf16.mxu0 0
        %450 = vmatpush1.bf16.msra.mxu0 0
        %451 = vmatprep.subr.bf16.mxu0 0
        %452 = vmatpush1.bf16.msra.mxu0 0
        %453 = vmatprep.subr.bf16.mxu0 0
        %454 = vmatpush1.bf16.msra.mxu0 0
        %455 = vmatprep.subr.bf16.mxu0 0
        %456 = vmatpush1.bf16.msra.mxu0 0
        %457 = vmatprep.mubr.bf16.mxu0 0
        %458 = vmatmul.mubr.bf16.gmra.mrb[0].mxu0 %v423
        %v459 = vpop.f32.mrb[0].mxu0
        %v460 = vadd.f32 %v364, %v459
        %v461 = vpop.f32.mrb[0].mxu0
        %v462 = vadd.f32 %v368, %v461
        %v463 = vpop.f32.mrb[0].mxu0
        %v464 = vpop.f32.mrb[0].mxu0
        %465 = vdwg.mxu0
        %466 = vmatprep.subr.bf16.mxu0 %v408
        %467 = vmatpush1.bf16.msra.mxu0 %v407
        %468 = vmatprep.subr.bf16.mxu0 %v412
        %469 = vmatpush1.bf16.msra.mxu0 %v411
        %470 = vmatprep.subr.bf16.mxu0 0
        %471 = vmatpush1.bf16.msra.mxu0 0
        %472 = vmatprep.subr.bf16.mxu0 0
        %473 = vmatpush1.bf16.msra.mxu0 0
        %474 = vmatprep.subr.bf16.mxu0 0
        %475 = vmatpush1.bf16.msra.mxu0 0
        %476 = vmatprep.subr.bf16.mxu0 0
        %477 = vmatpush1.bf16.msra.mxu0 0
        %478 = vmatprep.subr.bf16.mxu0 0
        %479 = vmatpush1.bf16.msra.mxu0 0
        %480 = vmatprep.subr.bf16.mxu0 0
        %481 = vmatpush1.bf16.msra.mxu0 0
        %482 = vmatprep.subr.bf16.mxu0 0
        %483 = vmatpush1.bf16.msra.mxu0 0
        %484 = vmatprep.subr.bf16.mxu0 0
        %485 = vmatpush1.bf16.msra.mxu0 0
        %486 = vmatprep.subr.bf16.mxu0 0
        %487 = vmatpush1.bf16.msra.mxu0 0
        %488 = vmatprep.subr.bf16.mxu0 0
        %489 = vmatpush1.bf16.msra.mxu0 0
        %490 = vmatprep.subr.bf16.mxu0 0
        %491 = vmatpush1.bf16.msra.mxu0 0
        %492 = vmatprep.subr.bf16.mxu0 0
        %493 = vmatpush1.bf16.msra.mxu0 0
        %494 = vmatprep.subr.bf16.mxu0 0
        %495 = vmatpush1.bf16.msra.mxu0 0
        %496 = vmatprep.subr.bf16.mxu0 0
        %497 = vmatpush1.bf16.msra.mxu0 0
        %498 = vmatprep.mubr.bf16.mxu0 0
        %499 = vmatmul.mubr.bf16.gmra.mrb[0].mxu0 %v423
        %v500 = vpop.f32.mrb[0].mxu0
        %v501 = vadd.f32 %v372, %v500
        %v502 = vpop.f32.mrb[0].mxu0
        %v503 = vadd.f32 %v376, %v502
        %v504 = vpop.f32.mrb[0].mxu0
        %v505 = vpop.f32.mrb[0].mxu0
        %506 = vdwg.mxu0
        %v507 = vld [vmem:[#allocation2] sm:$0xff]
        %v508 = vmax.f32 %v460, %v462
        %v509 = vmax.f32 %v501, %v503
        %v510 = vmax.f32 %v508, %v509
        %511 = vmax.xlane.f32.xlu0 %v510
        %v512 = vpop.xlane.xlu0 %511
        %v513 = vmax.f32 %v507, %v512
        %515 = vset.pattern.permute.xlu0 0
        %516 = vperm.xlu0 %515, %v513
        %v517 = vpop.permute.xlu0 %516
        %v519 = vsub.f32 %v460, %v517
        %v520 = vsub.f32 %v462, %v517
        %v521 = vsub.f32 %v501, %v517
        %v522 = vsub.f32 %v503, %v517
        %v523 = vmul.f32 %v519, 1.442695
        %v524 = vpow.pop %v523
        %v525 = vmul.f32 %v520, 1.442695
        %v526 = vpow.pop %v525
        %v527 = vmul.f32 %v521, 1.442695
        %v528 = vpow.pop %v527
        %v529 = vmul.f32 %v522, 1.442695
        %v530 = vpow.pop %v529
        %v531 = vsub.f32 %v507, %v513
        %v532 = vmul.f32 %v531, 1.442695
        %v533 = vpow.pop %v532
        %v534 = vld [vmem:[%s339] sm:$0xff]
        %v535 = vmul.f32 %v533, %v534
        %v536 = vadd.f32 %v524, %v526
        %v537 = vadd.f32 %v536, %v528
        %v538 = vadd.f32 %v537, %v530
        %539 = vadd.xlane.f32.xlu0 %v538
        %v540 = vpop.xlane.xlu0 %539
        %v541 = vadd.f32 %v535, %v540
        %vm542 = vcmask 7168
        %543 = vst.msk [vmem:[%s339] sm:$0xff] %vm542, %v541
        %544 = vst.msk [vmem:[#allocation2] sm:$0xff] %vm542, %v513
        %v545 = vlaneseq
        %v546 = vand.u32 %v545, 127
        %v547 = vstv %s22
        %vm548 = vcmp.eq.s32.totalorder %v546, %v547
        %v549 = vld [vmem:[%s335] sm:$0xff]
        %v550 = vsel %vm548, %v517, %v549
        %vm551 = vcmask 31744
        %552 = vst.msk [vmem:[%s335] sm:$0xff] %vm551, %v550
        %553 = vst [vmem:[%s330] sm:$0xff] %v524
        %554 = vst [vmem:[%s330 + $0x8] sm:$0xff] %v526
        %555 = vst [vmem:[%s330 + $0x10] sm:$0xff] %v528
        %556 = vst [vmem:[%s330 + $0x18] sm:$0xff] %v530
        %s557 = smul.u32 4, %s22
        %p558 = scmp.lt.s32.totalorder %s21, 1
        %s559 = scalar_select %p558, %s21, 1
        %p560 = scmp.lt.s32.totalorder %s557, 15
        %s561 = scalar_select %p560, %s557, 15
        %s562 = smul.addr %s559, 16
        %s563 = sadd.s32 %s561, %s562
        %s564 = smul.addr %s563, 8
        %s565 = scalar_lea.vmem %s3, %s564
        %p566 = scmp.lt.s32.totalorder %s21, 1
        %s567 = scalar_select %p566, %s21, 1
        %s568 = smul.addr %s567, 8
        %s569 = scalar_lea.vmem %s4, %s568
        %p570 = scmp.lt.s32.totalorder %s21, 1
        %s571 = scalar_select %p570, %s21, 1
        %s572 = smul.addr %s571, 8
        %s573 = scalar_lea.vmem %s5, %s572
        // Predicated region
        $region60: #{word2vec_forward.1} parent=50 // pred_check
          %p574 = pneg %p127
        $region61: #{word2vec_forward.1} parent=50 // pred_check_branch
          %576 = sbr.rel (%p574) target = $region63
        $region62: #{word2vec_forward.1} parent=50 // pred_region
          %s577 = smul.u32 4, %s22
        $region63: #{word2vec_forward.1} parent=50 // pred_fallthru
          _
        // Predicated region
        $region64: #{word2vec_forward.1} parent=50 // pred_check
          %p578 = pneg %p153
        $region65: #{word2vec_forward.1} parent=50 // pred_check_branch
          %580 = sbr.rel (%p578) target = $region67
        $region66: #{word2vec_forward.1} parent=50 // pred_region
          _
        $region67: #{word2vec_forward.1} parent=50 // pred_fallthru
          _
        // Predicated region
        $region68: #{word2vec_forward.1} parent=50 // pred_check
          %p581 = pneg %p179
        $region69: #{word2vec_forward.1} parent=50 // pred_check_branch
          %583 = sbr.rel (%p581) target = $region71
        $region70: #{word2vec_forward.1} parent=50 // pred_region
          _
        $region71: #{word2vec_forward.1} parent=50 // pred_fallthru
          _
      $region51: #{word2vec_forward.1} parent=5 // pred_fallthru
        _
      %p584 = scmp.le.s32.totalorder 2, %s12
      // Predicated region
      $region72: #{word2vec_forward.1} parent=5 // pred_check
        %p585 = pneg %p584
      $region73: #{word2vec_forward.1} parent=5 // pred_check_branch
        %587 = sbr.rel (%p585) target = $region75
      $region74: #{word2vec_forward.1} parent=5 // pred_region
        %s588 = ssub.s32 %s12, 2
        // Predicated region
        $region76: #{word2vec_forward.1} parent=74 // pred_check
          %p589 = pneg %p133
        $region77: #{word2vec_forward.1} parent=74 // pred_check_branch
          %591 = sbr.rel (%p589) target = $region79
        $region78: #{word2vec_forward.1} parent=74 // pred_region
          %s592 = smul.u32 4, %s24
          %p593 = scmp.lt.s32.totalorder %s23, 1
          %s594 = scalar_select %p593, %s23, 1
          %p595 = scmp.lt.s32.totalorder %s592, 15
          %s596 = scalar_select %p595, %s592, 15
          %s597 = smul.addr %s594, 16
          %s598 = sadd.s32 %s596, %s597
          %s599 = smul.addr %s598, 8
          %s600 = scalar_lea.vmem %s3, %s599
        $region79: #{word2vec_forward.1} parent=74 // pred_fallthru
          _
        // Predicated region
        $region80: #{word2vec_forward.1} parent=74 // pred_check
          %p601 = pneg %p159
        $region81: #{word2vec_forward.1} parent=74 // pred_check_branch
          %603 = sbr.rel (%p601) target = $region83
        $region82: #{word2vec_forward.1} parent=74 // pred_region
          %p604 = scmp.lt.s32.totalorder %s23, 1
          %s605 = scalar_select %p604, %s23, 1
          %s606 = smul.addr %s605, 8
          %s607 = scalar_lea.vmem %s4, %s606
        $region83: #{word2vec_forward.1} parent=74 // pred_fallthru
          _
        // Predicated region
        $region84: #{word2vec_forward.1} parent=74 // pred_check
          %p608 = pneg %p185
        $region85: #{word2vec_forward.1} parent=74 // pred_check_branch
          %610 = sbr.rel (%p608) target = $region87
        $region86: #{word2vec_forward.1} parent=74 // pred_region
          %p611 = scmp.lt.s32.totalorder %s23, 1
          %s612 = scalar_select %p611, %s23, 1
          %s613 = smul.addr %s612, 8
          %s614 = scalar_lea.vmem %s5, %s613
        $region87: #{word2vec_forward.1} parent=74 // pred_fallthru
          _
      $region75: #{word2vec_forward.1} parent=5 // pred_fallthru
        _
    $region6: #{word2vec_forward.1} parent=1 // loop_footer
      %s16 = sadd.s32 1, %s12
    $region7: #{word2vec_forward.1} parent=1 // loop_footer_branch
      %11 = sbr.rel target = $region3
    $region8: #{word2vec_forward.1} parent=1 // loop_exit
      _

</llo_original>
